<compile_context>
chip_gen: v5e
topology: v5e:2x2
jax: 0.10.0
libtpu: 0.0.40
codegen_flags: <defaults>
</compile_context>

<pallas_src>
import functools

import jax
import jax.numpy as jnp
from jax.experimental import pallas as pl
from jax.experimental.pallas import tpu as pltpu


_LN_EPS = 1e-5
_VMEM_BUDGET = 24 * 1024 * 1024           # tiling target (bytes), safe on v5e/v6e/v7x
_VMEM_LIMIT = 40 * 1024 * 1024            # scoped-VMEM limit handed to Mosaic
_MAX_TILE_T = 1024                        # rows per token tile cap
_DEFAULT_RESIDENT_WEIGHT_BYTES = 8 * 1024 * 1024


def _round_up(x, m):
    return (x + m - 1) // m * m


def _layer_block(h, w, b):
    """One pre-norm residual MLP block.  h:(T,D) f32, w:(D,D) bf16, b:(1,D) f32."""
    mu = jnp.mean(h, axis=-1, keepdims=True)
    var = jnp.mean(jnp.square(h - mu), axis=-1, keepdims=True)
    hn = (h - mu) * jax.lax.rsqrt(var + _LN_EPS)
    # bf16 LHS/RHS on the MXU, fp32 accumulation.
    y = jnp.dot(hn.astype(jnp.bfloat16), w, preferred_element_type=jnp.float32)
    y = jax.nn.gelu(y + b)
    return h + y


def _fused_kernel(x_ref, w_ref, b_ref, o_ref, *, n_layers):
    """grid = (token_tiles,): weights resident in VMEM, layers looped in-kernel.

    x_ref : (Tt, D)            token tile
    w_ref : (n_layers, D, D)   all weights (bf16)
    b_ref : (n_layers, 1, D)   all biases (f32)
    o_ref : (Tt, D)
    """
    h0 = x_ref[...].astype(jnp.float32)

    def body(l, h):
        return _layer_block(h, w_ref[l], b_ref[l])

    h = jax.lax.fori_loop(0, n_layers, body, h0)
    o_ref[...] = h.astype(o_ref.dtype)


def _streamed_kernel(x_ref, w_ref, b_ref, o_ref, h_ref):
    """grid = (token_tiles, layers): per-layer weights streamed, fp32 scratch carry.

    x_ref : (Tt, D)     read only on layer 0 of each tile
    w_ref : (1, D, D)   this layer's weight (bf16)
    b_ref : (1, 1, D)   this layer's bias (f32)
    o_ref : (Tt, D)     written only on the last layer
    h_ref : (Tt, D)     fp32 VMEM carry
    """
    layer = pl.program_id(1)

    @pl.when(layer == 0)
    def _():
        h_ref[...] = x_ref[...].astype(jnp.float32)

    h_ref[...] = _layer_block(h_ref[...], w_ref[0], b_ref[0])

    @pl.when(layer == pl.num_programs(1) - 1)
    def _():
        o_ref[...] = h_ref[...].astype(o_ref.dtype)


def layer_stack_forward(x, weights, biases, *, half_layers=False,
                        max_resident_weight_bytes=_DEFAULT_RESIDENT_WEIGHT_BYTES):
    """Apply the layer stack.

    x       : (B, S, D) activations
    weights : (L, D, D)
    biases  : (L, D)
    """
    B, S, D = x.shape
    L = weights.shape[0]
    # min_num_layers_layer_dropout == num_layers -> n_layers is deterministic.
    n_layers = L // 2 if half_layers else L
    if n_layers == 0:
        return x

    T = B * S
    xb = jnp.dtype(x.dtype).itemsize
    x2d = x.reshape(T, D)

    w_bf16 = weights.astype(jnp.bfloat16)
    b3 = biases.astype(jnp.float32).reshape(L, 1, D)

    weight_bytes = n_layers * D * D * 2  # bf16 resident footprint
    fused = weight_bytes <= max_resident_weight_bytes

    # --- choose token tile against the VMEM budget ------------------------
    if fused:
        # weights + biases (conservatively 2x for pipeline buffers)
        extra = 2 * weight_bytes + 2 * n_layers * D * 4
        # x (2 buf) + out (2 buf) + fp32 carry headroom, per row
        per_row = D * (4 * xb + 8)
    else:
        # one (D,D) bf16 weight + bias, double-buffered
        extra = 2 * (D * D * 2) + 2 * (D * 4)
        # x (2 buf) + out (2 buf) + fp32 scratch carry, per row
        per_row = D * (4 * xb + 4)

    t8 = _round_up(T, 8)
    avail = max(_VMEM_BUDGET - extra, per_row * 8)
    tile_t = max(8, min(t8, _MAX_TILE_T, (avail // per_row) // 8 * 8))
    t_pad = _round_up(T, tile_t)
    n_tiles = t_pad // tile_t

    if t_pad != T:
        x2d = jnp.pad(x2d, ((0, t_pad - T), (0, 0)))

    out_shape = jax.ShapeDtypeStruct((t_pad, D), x.dtype)
    flops = 2 * t_pad * D * D * n_layers
    transcendentals = t_pad * D * n_layers  # gelu tanh (rsqrt etc. negligible)

    if fused:
        w_use = w_bf16[:n_layers]
        b_use = b3[:n_layers]
        cost = pl.CostEstimate(
            flops=flops,
            transcendentals=transcendentals,
            bytes_accessed=int(x2d.size * xb + t_pad * D * xb
                               + w_use.size * 2 + b_use.size * 4),
        )
        out = pl.pallas_call(
            functools.partial(_fused_kernel, n_layers=n_layers),
            out_shape=out_shape,
            grid_spec=pltpu.PrefetchScalarGridSpec(
                num_scalar_prefetch=0,
                grid=(n_tiles,),
                in_specs=[
                    pl.BlockSpec((tile_t, D), lambda i: (i, 0)),          # x tile
                    pl.BlockSpec((n_layers, D, D), lambda i: (0, 0, 0)),  # all weights
                    pl.BlockSpec((n_layers, 1, D), lambda i: (0, 0, 0)),  # all biases
                ],
                out_specs=pl.BlockSpec((tile_t, D), lambda i: (i, 0)),
            ),
            compiler_params=pltpu.CompilerParams(
                dimension_semantics=("parallel",),
                vmem_limit_bytes=_VMEM_LIMIT,
            ),
            cost_estimate=cost,
        )(x2d, w_use, b_use)
    else:
        cost = pl.CostEstimate(
            flops=flops,
            transcendentals=transcendentals,
            bytes_accessed=int(x2d.size * xb + t_pad * D * xb
                               + n_tiles * n_layers * (D * D * 2 + D * 4)),
        )
        out = pl.pallas_call(
            _streamed_kernel,
            out_shape=out_shape,
            grid_spec=pltpu.PrefetchScalarGridSpec(
                num_scalar_prefetch=0,
                grid=(n_tiles, n_layers),
                in_specs=[
                    pl.BlockSpec((tile_t, D), lambda i, l: (i, 0)),      # x tile (read @ layer 0)
                    pl.BlockSpec((1, D, D), lambda i, l: (l, 0, 0)),     # layer weight (bf16)
                    pl.BlockSpec((1, 1, D), lambda i, l: (l, 0, 0)),     # layer bias
                ],
                out_specs=pl.BlockSpec((tile_t, D), lambda i, l: (i, 0)),
                scratch_shapes=[pltpu.VMEM((tile_t, D), jnp.float32)],   # fp32 carry
            ),
            compiler_params=pltpu.CompilerParams(
                dimension_semantics=("parallel", "arbitrary"),
                vmem_limit_bytes=_VMEM_LIMIT,
            ),
            cost_estimate=cost,
        )(x2d, w_bf16, b3)

    return out[:T].reshape(B, S, D)


def _reference_forward(x, weights, biases, *, half_layers=False):
    """Pure-JAX reference matching the kernel numerics (bf16 matmul, fp32 carry)."""
    L = weights.shape[0]
    n_layers = L // 2 if half_layers else L
    w = weights.astype(jnp.bfloat16)
    b = biases.astype(jnp.float32)
    h = x.astype(jnp.float32)
    for l in range(n_layers):
        mu = jnp.mean(h, axis=-1, keepdims=True)
        var = jnp.mean(jnp.square(h - mu), axis=-1, keepdims=True)
        hn = (h - mu) * jax.lax.rsqrt(var + _LN_EPS)
        y = jnp.dot(hn.astype(jnp.bfloat16), w[l],
                    preferred_element_type=jnp.float32) + b[l]
        h = h + jax.nn.gelu(y)
    return h.astype(x.dtype)


if __name__ == "__main__":
    key = jax.random.PRNGKey(0)
    B, S, D = 2, 8, 128
    num_layers = 4

    kx, kw, kb = jax.random.split(key, 3)
    x = jax.random.normal(kx, (B, S, D), dtype=jnp.float32)
    weights = jax.random.normal(kw, (num_layers, D, D), dtype=jnp.float32) / jnp.sqrt(D)
    biases = jax.random.normal(kb, (num_layers, D), dtype=jnp.float32) * 0.01

    # Fused (weights-resident, single grid axis) path.
    out = jax.block_until_ready(layer_stack_forward(x, weights, biases))
    ref = _reference_forward(x, weights, biases)
    assert out.shape == (B, S, D)
    assert jnp.allclose(out, ref, atol=1e-2, rtol=1e-2), "fused kernel mismatch vs reference"

    # half_layers path (num_layers // 2 layers).
    out_half = jax.block_until_ready(
        layer_stack_forward(x, weights, biases, half_layers=True))
    ref_half = _reference_forward(x, weights, biases, half_layers=True)
    assert jnp.allclose(out_half, ref_half, atol=1e-2, rtol=1e-2), "half_layers mismatch"

    # Streamed (per-layer weight streaming) path, forced by a zero resident budget.
    out_streamed = jax.block_until_ready(
        layer_stack_forward(x, weights, biases, max_resident_weight_bytes=0))
    assert jnp.allclose(out_streamed, ref, atol=1e-2, rtol=1e-2), "streamed kernel mismatch"

    print("KERNEL_OK")
</pallas_src>

<mosaic_0001>
module attributes {stable_mosaic.version = 11 : i64} {
  func.func @_fused_kernel(%arg0: i32, %arg1: memref<16x128xf32, #tpu.memory_space<vmem>>, %arg2: memref<4x128x128xbf16, #tpu.memory_space<vmem>>, %arg3: memref<4x1x128xf32, #tpu.memory_space<vmem>>, %arg4: memref<16x128xf32, #tpu.memory_space<vmem>>) attributes {dimension_semantics = [#tpu.dimension_semantics<parallel>], iteration_bounds = array<i64: 1>, scalar_prefetch = 0 : i64, scratch_operands = 0 : i64, tpu.core_type = #tpu.core_type<tc>, window_params = [{transform_indices = @transform_0, window_bounds = array<i64: 16, 128>}, {pipeline_mode = #tpu.pipeline_mode<synchronous>, transform_indices = @transform_1, window_bounds = array<i64: 4, 128, 128>}, {pipeline_mode = #tpu.pipeline_mode<synchronous>, transform_indices = @transform_2, window_bounds = array<i64: 4, 1, 128>}, {transform_indices = @transform_3, window_bounds = array<i64: 16, 128>}]} {
    %c0 = arith.constant 0 : index
    %c0_0 = arith.constant 0 : index
    %0 = vector.load %arg1[%c0, %c0_0] : memref<16x128xf32, #tpu.memory_space<vmem>>, vector<16x128xf32>
    %c0_i32 = arith.constant 0 : i32
    %c4_i32 = arith.constant 4 : i32
    %1 = arith.addi %c0_i32, %c4_i32 : i32
    %c1_i32 = arith.constant 1 : i32
    %2 = scf.for %arg5 = %c0_i32 to %1 step %c1_i32 iter_args(%arg6 = %0) -> (vector<16x128xf32>)  : i32 {
      %4 = arith.index_cast %arg5 : i32 to index
      %c0_4 = arith.constant 0 : index
      %c0_5 = arith.constant 0 : index
      %5 = vector.load %arg2[%4, %c0_4, %c0_5] : memref<4x128x128xbf16, #tpu.memory_space<vmem>>, vector<1x128x128xbf16>
      %6 = vector.shape_cast %5 : vector<1x128x128xbf16> to vector<128x128xbf16>
      %7 = arith.index_cast %arg5 : i32 to index
      %c0_6 = arith.constant 0 : index
      %c0_7 = arith.constant 0 : index
      %8 = vector.load %arg3[%7, %c0_6, %c0_7] : memref<4x1x128xf32, #tpu.memory_space<vmem>>, vector<1x1x128xf32>
      %9 = vector.shape_cast %8 : vector<1x1x128xf32> to vector<1x128xf32>
      %cst = arith.constant dense<0.000000e+00> : vector<16xf32>
      %10 = vector.multi_reduction <add>, %arg6, %cst [1] : vector<16x128xf32> to vector<16xf32>
      %11 = vector.shape_cast %10 : vector<16xf32> to vector<16x1xf32>
      %cst_8 = arith.constant 1.280000e+02 : f32
      %12 = vector.broadcast %cst_8 : f32 to vector<16x1xf32>
      %13 = arith.divf %11, %12 : vector<16x1xf32>
      %14 = vector.broadcast %13 : vector<16x1xf32> to vector<16x128xf32>
      %15 = arith.subf %arg6, %14 : vector<16x128xf32>
      %16 = arith.mulf %15, %15 : vector<16x128xf32>
      %cst_9 = arith.constant dense<0.000000e+00> : vector<16xf32>
      %17 = vector.multi_reduction <add>, %16, %cst_9 [1] : vector<16x128xf32> to vector<16xf32>
      %18 = vector.shape_cast %17 : vector<16xf32> to vector<16x1xf32>
      %cst_10 = arith.constant 1.280000e+02 : f32
      %19 = vector.broadcast %cst_10 : f32 to vector<16x1xf32>
      %20 = arith.divf %18, %19 : vector<16x1xf32>
      %21 = vector.broadcast %13 : vector<16x1xf32> to vector<16x128xf32>
      %22 = arith.subf %arg6, %21 : vector<16x128xf32>
      %cst_11 = arith.constant 9.99999974E-6 : f32
      %23 = vector.broadcast %cst_11 : f32 to vector<16x1xf32>
      %24 = arith.addf %20, %23 : vector<16x1xf32>
      %25 = math.rsqrt %24 : vector<16x1xf32>
      %26 = vector.broadcast %25 : vector<16x1xf32> to vector<16x128xf32>
      %27 = arith.mulf %22, %26 : vector<16x128xf32>
      %28 = arith.truncf %27 : vector<16x128xf32> to vector<16x128xbf16>
      %cst_12 = arith.constant dense<0.000000e+00> : vector<16x128xf32>
      %29 = tpu.matmul %28, %6, %cst_12 {dimension_numbers = #tpu.dot_dimension_numbers<[1], [0], [0], [1], [0, 0, 1, 1], [], []>} : vector<16x128xbf16>, vector<128x128xbf16>, vector<16x128xf32> -> vector<16x128xf32>
      %30 = vector.broadcast %9 : vector<1x128xf32> to vector<16x128xf32>
      %31 = arith.addf %29, %30 : vector<16x128xf32>
      %32 = arith.mulf %31, %31 : vector<16x128xf32>
      %33 = arith.mulf %31, %32 : vector<16x128xf32>
      %cst_13 = arith.constant 4.471500e-02 : f32
      %34 = vector.broadcast %cst_13 : f32 to vector<16x128xf32>
      %35 = arith.mulf %34, %33 : vector<16x128xf32>
      %36 = arith.addf %31, %35 : vector<16x128xf32>
      %cst_14 = arith.constant 0.797884583 : f32
      %37 = vector.broadcast %cst_14 : f32 to vector<16x128xf32>
      %38 = arith.mulf %37, %36 : vector<16x128xf32>
      %39 = math.tanh %38 : vector<16x128xf32>
      %cst_15 = arith.constant 1.000000e+00 : f32
      %40 = vector.broadcast %cst_15 : f32 to vector<16x128xf32>
      %41 = arith.addf %40, %39 : vector<16x128xf32>
      %cst_16 = arith.constant 5.000000e-01 : f32
      %42 = vector.broadcast %cst_16 : f32 to vector<16x128xf32>
      %43 = arith.mulf %42, %41 : vector<16x128xf32>
      %44 = arith.mulf %31, %43 : vector<16x128xf32>
      %45 = arith.addf %arg6, %44 : vector<16x128xf32>
      scf.yield %45 : vector<16x128xf32>
    }
    %c4_i32_1 = arith.constant 4 : i32
    %c0_2 = arith.constant 0 : index
    %c0_3 = arith.constant 0 : index
    %3 = vector.load %arg4[%c0_2, %c0_3] : memref<16x128xf32, #tpu.memory_space<vmem>>, vector<16x128xf32>
    tpu.vector_store %arg4[%c0_2, %c0_3], %2 {strides = array<i32>} : memref<16x128xf32, #tpu.memory_space<vmem>>, vector<16x128xf32>,
    return
  }
  func.func @transform_0(%arg0: i32) -> (i32, i32) {
    %c0_i32 = arith.constant 0 : i32
    %c0_i32_0 = arith.constant 0 : i32
    return %arg0, %c0_i32 : i32, i32
  }
  func.func @transform_1(%arg0: i32) -> (i32, i32, i32) {
    %c0_i32 = arith.constant 0 : i32
    %c0_i32_0 = arith.constant 0 : i32
    %c0_i32_1 = arith.constant 0 : i32
    %c0_i32_2 = arith.constant 0 : i32
    return %c0_i32, %c0_i32_0, %c0_i32_1 : i32, i32, i32
  }
  func.func @transform_2(%arg0: i32) -> (i32, i32, i32) {
    %c0_i32 = arith.constant 0 : i32
    %c0_i32_0 = arith.constant 0 : i32
    %c0_i32_1 = arith.constant 0 : i32
    %c0_i32_2 = arith.constant 0 : i32
    return %c0_i32, %c0_i32_0, %c0_i32_1 : i32, i32, i32
  }
  func.func @transform_3(%arg0: i32) -> (i32, i32) {
    %c0_i32 = arith.constant 0 : i32
    %c0_i32_0 = arith.constant 0 : i32
    return %arg0, %c0_i32 : i32, i32
  }
}

</mosaic_0001>

<llo_original>
// kernel: tpu_custom_call.1
$region0: #{tpu_custom_call.1}
  #allocation0 [shape = 'u32[]', space=smem, size = 0x4, offset = 0x4, fixed_abs, tag = 'smem constant byte address 0x4 - core index']
  #allocation1 [shape = 'u32[72,128]{1,0:T(1,128)}', space=vmem, size = 0x9000, scoped, tag = 'internal scratch']
  %s0 = inlined_call_operand.hbm [shape: f32[16,128], index: 0, kind: input, shape index: {}]
  %s1 = inlined_call_operand.hbm [shape: bf16[4,128,128], index: 1, kind: input, shape index: {}]
  %s2 = inlined_call_operand.hbm [shape: f32[4,1,128], index: 2, kind: input, shape index: {}]
  %s3 = inlined_call_operand.hbm [shape: f32[16,128], index: 3, kind: output, shape index: {}]
  %s4 = sld [smem:[#allocation0]]
  $region41: #{tpu_custom_call.1} parent=0
    _
  %s6 = ssub.s32 1, %s4
  %s7 = scalar_select 0, %s6, %s4
  $region1: #{tpu_custom_call.1} parent=0
    #allocation2 [shape = 'u8[8192]{0}', space=vmem, size = 0x2000, scoped, tag = 'input window, operand 0, single buffered']
    #allocation3 [shape = 's32[1]{0}', space=sflag, size = 0x4, scoped, tag = 'scoped memory for tpu_custom_call.1']
    #allocation4 [shape = 's32[1]{0}', space=sflag, size = 0x4, scoped, tag = 'scoped memory for tpu_custom_call.1']
    #allocation5 [shape = 'u8[131072]{0}', space=vmem, size = 0x20000, scoped, tag = 'input window, operand 1, single buffered']
    #allocation6 [shape = 's32[1]{0}', space=sflag, size = 0x4, scoped, tag = 'scoped memory for tpu_custom_call.1']
    #allocation7 [shape = 'u8[2048]{0}', space=vmem, size = 0x800, scoped, tag = 'input window, operand 2, single buffered']
    #allocation8 [shape = 'u8[8192]{0}', space=vmem, size = 0x2000, scoped, tag = 'output window, operand 0, single buffered']
    %8 = vsyncpa [#allocation3], 0
    %9 = vsyncpa [#allocation6], 0
    %10 = vsyncpa [#allocation4], 0
    // Predicated region
    $region2: #{tpu_custom_call.1} parent=1 // pred_check
      _
    $region3: #{tpu_custom_call.1} parent=1 // pred_check_branch
      %12 = sbr.rel (0) target = $region5
    $region4: #{tpu_custom_call.1} parent=1 // pred_region
      %14 = vsyncadd [#allocation3], 0
      %s15 = sshll.u32 %s0, 4
      %s16 = int_to_ptr.hbm [resolvable:$true] %s15
      %s17 = sshll.u32 [#allocation2], 4
      %s18 = int_to_ptr.vmem [resolvable:$true] %s17
      %23 = dma.hbm_to_vmem [thread:$0]  %s16, 256, %s18, [#allocation3], 128, 128, 8
    $region5: #{tpu_custom_call.1} parent=1 // pred_fallthru
      _
    // Predicated region
    $region6: #{tpu_custom_call.1} parent=1 // pred_check
      _
    $region7: #{tpu_custom_call.1} parent=1 // pred_check_branch
      %25 = sbr.rel (0) target = $region9
    $region8: #{tpu_custom_call.1} parent=1 // pred_region
      %27 = vsyncadd [#allocation6], 0
      %s28 = sshll.u32 %s1, 4
      %s29 = int_to_ptr.hbm [resolvable:$true] %s28
      %s30 = sshll.u32 [#allocation5], 4
      %s31 = int_to_ptr.vmem [resolvable:$true] %s30
      %36 = dma.hbm_to_vmem [thread:$0]  %s29, 4096, %s31, [#allocation6], 64, 64, 4
    $region9: #{tpu_custom_call.1} parent=1 // pred_fallthru
      _
    // Predicated region
    $region10: #{tpu_custom_call.1} parent=1 // pred_check
      _
    $region11: #{tpu_custom_call.1} parent=1 // pred_check_branch
      %38 = sbr.rel (0) target = $region13
    $region12: #{tpu_custom_call.1} parent=1 // pred_region
      %40 = vsyncadd [#allocation6], 0
      %s41 = sshll.u32 %s2, 4
      %s42 = int_to_ptr.hbm [resolvable:$true] %s41
      %s43 = sshll.u32 [#allocation7], 4
      %s44 = int_to_ptr.vmem [resolvable:$true] %s43
      %49 = dma.hbm_to_vmem [thread:$0]  %s42, 64, %s44, [#allocation6], 16, 16, 1
    $region13: #{tpu_custom_call.1} parent=1 // pred_fallthru
      _
    // Predicated region
    $region14: #{tpu_custom_call.1} parent=1 // pred_check
      _
    $region15: #{tpu_custom_call.1} parent=1 // pred_check_branch
      %51 = sbr.rel (0) target = $region17
    $region16: #{tpu_custom_call.1} parent=1 // pred_region
      %53 = dma.done [#allocation3], 256
    $region17: #{tpu_custom_call.1} parent=1 // pred_fallthru
      _
    // Predicated region
    $region18: #{tpu_custom_call.1} parent=1 // pred_check
      _
    $region19: #{tpu_custom_call.1} parent=1 // pred_check_branch
      %55 = sbr.rel (0) target = $region21
    $region20: #{tpu_custom_call.1} parent=1 // pred_region
      %57 = dma.done [#allocation6], 4096
    $region21: #{tpu_custom_call.1} parent=1 // pred_fallthru
      _
    // Predicated region
    $region22: #{tpu_custom_call.1} parent=1 // pred_check
      _
    $region23: #{tpu_custom_call.1} parent=1 // pred_check_branch
      %59 = sbr.rel (0) target = $region25
    $region24: #{tpu_custom_call.1} parent=1 // pred_region
      %61 = dma.done [#allocation6], 64
    $region25: #{tpu_custom_call.1} parent=1 // pred_fallthru
      _
    %v62 = vld [vmem:[#allocation2] sm:$0xff]
    %v63 = vld [vmem:[#allocation2 + $0x8] sm:$0xff]
    loop: start=0, step=1, limit=4
    $region26: #{tpu_custom_call.1} parent=1 // loop_pre_header
      _
    $region27: #{tpu_custom_call.1} parent=1 // loop_header
      %s65 = sphi 0, %s69
      %p66 = scmp.ge.s32.totalorder %s65, 4
      %v70 = vphi %v62, %v224
      %v71 = vphi %v63, %v225
    $region28: #{tpu_custom_call.1} parent=1 // loop_header_branch
      %68 = sbr.rel (%p66) target = $region32
    $region29: #{tpu_custom_call.1} parent=1 // loop_body
      %s72 = smul.u32 %s65, 16
      %s73 = smul.addr %s72, 4
      %s74 = scalar_lea.vmem [#allocation5], %s73
      %v75 = vld [vmem:[%s74] sm:$0xf]
      %v76 = vld [vmem:[%s74 + $0x4] sm:$0xf]
      %v77 = vld [vmem:[%s74 + $0x8] sm:$0xf]
      %v78 = vld [vmem:[%s74 + $0xc] sm:$0xf]
      %v79 = vld [vmem:[%s74 + $0x10] sm:$0xf]
      %v80 = vld [vmem:[%s74 + $0x14] sm:$0xf]
      %v81 = vld [vmem:[%s74 + $0x18] sm:$0xf]
      %v82 = vld [vmem:[%s74 + $0x1c] sm:$0xf]
      %v83 = vld [vmem:[%s74 + $0x20] sm:$0xf]
      %v84 = vld [vmem:[%s74 + $0x24] sm:$0xf]
      %v85 = vld [vmem:[%s74 + $0x28] sm:$0xf]
      %v86 = vld [vmem:[%s74 + $0x2c] sm:$0xf]
      %v87 = vld [vmem:[%s74 + $0x30] sm:$0xf]
      %v88 = vld [vmem:[%s74 + $0x34] sm:$0xf]
      %v89 = vld [vmem:[%s74 + $0x38] sm:$0xf]
      %v90 = vld [vmem:[%s74 + $0x3c] sm:$0xf]
      %s91 = scalar_lea.vmem [#allocation7], %s65
      %v92 = vld [vmem:[%s91] sm:$0x1]
      %93 = vadd.xlane.f32.xlu0 %v70
      %v94 = vpop.xlane.xlu0 %93
      %95 = vadd.xlane.f32.xlu0 %v71
      %v96 = vpop.xlane.xlu0 %95
      %v97 = vrcp.pop 128.0
      %v98 = vmul.f32 128.0, %v97
      %v99 = vsub.f32 1.0, %v98
      %v100 = vmul.f32 %v97, %v99
      %v101 = vadd.f32 %v97, %v100
      %vm102 = vweird.f32 %v97
      %v103 = vsel %vm102, %v97, %v101
      %v104 = vmul.f32 %v94, %v103
      %v105 = vmul.f32 %v96, %v103
      %v106 = vsub.f32 %v70, %v104
      %v107 = vsub.f32 %v71, %v105
      %v108 = vmul.f32 %v106, %v106
      %v109 = vmul.f32 %v107, %v107
      %110 = vadd.xlane.f32.xlu0 %v108
      %v111 = vpop.xlane.xlu0 %110
      %112 = vadd.xlane.f32.xlu0 %v109
      %v113 = vpop.xlane.xlu0 %112
      %v114 = vmul.f32 %v111, %v103
      %v115 = vmul.f32 %v113, %v103
      %v116 = vadd.f32 %v114, 1e-05
      %v117 = vadd.f32 %v115, 1e-05
      %v118 = vrsqrt.pop %v116
      %v119 = vmul.f32 %v118, %v116
      %v120 = vmul.f32 %v119, %v118
      %v121 = vmul.f32 0.5, %v120
      %v122 = vsub.f32 1.5, %v121
      %v123 = vmul.f32 %v118, %v122
      %vm124 = vweird.f32 %v116
      %vm125 = vweird.f32 %v118
      %vm126 = vmor %vm124, %vm125
      %v127 = vsel %vm126, %v118, %v123
      %v128 = vrsqrt.pop %v117
      %v129 = vmul.f32 %v128, %v117
      %v130 = vmul.f32 %v129, %v128
      %v131 = vmul.f32 0.5, %v130
      %v132 = vsub.f32 1.5, %v131
      %v133 = vmul.f32 %v128, %v132
      %vm134 = vweird.f32 %v117
      %vm135 = vweird.f32 %v128
      %vm136 = vmor %vm134, %vm135
      %v137 = vsel %vm136, %v128, %v133
      %v138 = vmul.f32 %v106, %v127
      %v139 = vmul.f32 %v107, %v137
      %v140 = vpack.c.bf16 %v139, %v138
      %v142 = vperm.slane %v92, 0
      %v160 = vunpack.c.l.b16 %v75
      %v161 = vunpack.c.l.b16 %v76
      %v162 = vunpack.c.l.b16 %v77
      %v163 = vunpack.c.l.b16 %v78
      %v164 = vunpack.c.l.b16 %v79
      %v165 = vunpack.c.l.b16 %v80
      %v166 = vunpack.c.l.b16 %v81
      %v167 = vunpack.c.l.b16 %v82
      %v168 = vunpack.c.l.b16 %v83
      %v169 = vunpack.c.l.b16 %v84
      %v170 = vunpack.c.l.b16 %v85
      %v171 = vunpack.c.l.b16 %v86
      %v172 = vunpack.c.l.b16 %v87
      %v173 = vunpack.c.l.b16 %v88
      %v174 = vunpack.c.l.b16 %v89
      %v175 = vunpack.c.l.b16 %v90
      %v176 = vpack.c.b16 %v161, %v160
      %v177 = vpack.c.b16 %v163, %v162
      %v178 = vpack.c.b16 %v165, %v164
      %v179 = vpack.c.b16 %v167, %v166
      %v180 = vpack.c.b16 %v169, %v168
      %v181 = vpack.c.b16 %v171, %v170
      %v182 = vpack.c.b16 %v173, %v172
      %v183 = vpack.c.b16 %v175, %v174
      %192 = vmatpush.bf16.msra.mxu0 %v183
      %193 = vmatpush.bf16.msra.mxu0 %v182
      %194 = vmatpush.bf16.msra.mxu0 %v181
      %195 = vmatpush.bf16.msra.mxu0 %v180
      %196 = vmatpush.bf16.msra.mxu0 %v179
      %197 = vmatpush.bf16.msra.mxu0 %v178
      %198 = vmatpush.bf16.msra.mxu0 %v177
      %199 = vmatpush.bf16.msra.mxu0 %v176
      %200 = vmatmul.bf16.gmra.mxu0 %v140
      %v201 = vpop.f32.mrf.mxu0
      %v202 = vadd.f32 %v142, %v201
      %v203 = vpop.f32.mrf.mxu0
      %v204 = vadd.f32 %v142, %v203
      %205 = vdwg.mxu0
      %v206 = vmul.f32 %v202, %v202
      %v207 = vmul.f32 %v204, %v204
      %v208 = vmul.f32 %v202, %v206
      %v209 = vmul.f32 %v204, %v207
      %v210 = vmul.f32 %v208, 0.044715
      %v211 = vmul.f32 %v209, 0.044715
      %v212 = vadd.f32 %v202, %v210
      %v213 = vadd.f32 %v204, %v211
      %v214 = vmul.f32 %v212, 0.7978846
      %v215 = vmul.f32 %v213, 0.7978846
      %v216 = vtanh.pop %v214
      %v217 = vtanh.pop %v215
      %v218 = vadd.f32 %v216, 1.0
      %v219 = vadd.f32 %v217, 1.0
      %v220 = vmul.f32 %v218, 0.5
      %v221 = vmul.f32 %v219, 0.5
      %v222 = vmul.f32 %v202, %v220
      %v223 = vmul.f32 %v204, %v221
      %v224 = vadd.f32 %v70, %v222
      %v225 = vadd.f32 %v71, %v223
    $region30: #{tpu_custom_call.1} parent=1 // loop_footer
      %s69 = sadd.s32 1, %s65
    $region31: #{tpu_custom_call.1} parent=1 // loop_footer_branch
      %64 = sbr.rel target = $region27
    $region32: #{tpu_custom_call.1} parent=1 // loop_exit
      _
    %226 = vst [vmem:[#allocation8] sm:$0xff] %v70
    %227 = vst [vmem:[#allocation8 + $0x8] sm:$0xff] %v71
    // Predicated region
    $region33: #{tpu_custom_call.1} parent=1 // pred_check
      _
    $region34: #{tpu_custom_call.1} parent=1 // pred_check_branch
      %229 = sbr.rel (0) target = $region36
    $region35: #{tpu_custom_call.1} parent=1 // pred_region
      %231 = vsyncadd [#allocation4], 0
      %s232 = sshll.u32 [#allocation8], 4
      %s233 = int_to_ptr.vmem [resolvable:$true] %s232
      %s234 = sshll.u32 %s3, 4
      %s235 = int_to_ptr.hbm [resolvable:$true] %s234
      %240 = dma.vmem_to_hbm [thread:$0]  %s233, 256, %s235, [#allocation4], 128, 128, 8
    $region36: #{tpu_custom_call.1} parent=1 // pred_fallthru
      _
    // Predicated region
    $region37: #{tpu_custom_call.1} parent=1 // pred_check
      _
    $region38: #{tpu_custom_call.1} parent=1 // pred_check_branch
      %242 = sbr.rel (0) target = $region40
    $region39: #{tpu_custom_call.1} parent=1 // pred_region
      %244 = dma.done [#allocation4], 256
    $region40: #{tpu_custom_call.1} parent=1 // pred_fallthru
      _
    %245 = vsyncpa [#allocation3], 1
    %246 = vsyncpa [#allocation6], 1
    %247 = vsyncpa [#allocation4], 1

</llo_original>
